<compile_context>
chip_gen: v6e
topology: v6e:2x2x1
jax: 0.10.0
libtpu: 0.0.40
codegen_flags: <defaults>
</compile_context>

<pallas_src>
import functools
import math

import jax
import jax.numpy as jnp
from jax.experimental import pallas as pl
from jax.experimental.pallas import tpu as pltpu

GAMMA = 1.5
ALPHA = 0.25
LANES = 128
SUBLANES = 8
MAX_TILE_ROWS = 4096      # 4096*128*4B = 2 MiB per input per buffer
PAD_LOGIT = -100.0        # (pred=-100, true=0) => ~zero loss contribution


def _cdiv(a, b):
    return -(-a // b)


def _round_up(a, m):
    return _cdiv(a, m) * m


def _sublane_packing(dtype):
    itemsize = jnp.dtype(dtype).itemsize
    return {4: 8, 2: 16, 1: 32}.get(itemsize, 8)


def _focal_loss_kernel(pred_ref, true_ref, out_ref, *, gamma, alpha,
                       valid_rows_last):
    i = pl.program_id(0)  # reduction ("arbitrary") axis

    @pl.when(i == 0)
    def _():
        out_ref[...] = jnp.zeros_like(out_ref)

    x = pred_ref[...].astype(jnp.float32)   # logits
    z = true_ref[...].astype(jnp.float32)   # targets in [0, 1]

    # Numerically stable BCE-with-logits (matches torch BCEWithLogitsLoss):
    #   loss = max(x, 0) - x*z + log(1 + exp(-|x|))
    # Share e = exp(-|x|) and (1 + e) between the BCE term and the sigmoid.
    e = jnp.exp(-jnp.abs(x))
    one_plus_e = 1.0 + e
    inv = pl.reciprocal(one_plus_e, approx=False)      # EUP, not a f32 divide
    bce = jnp.maximum(x, 0.0) - x * z + jnp.log(one_plus_e)

    # sigmoid(x) from the shared exp/reciprocal.
    pred_prob = jnp.where(x >= 0.0, 1.0, e) * inv

    # Focal modulation, algebraically reduced:
    #   q = 1 - p_t = p + z - 2*p*z ;  alpha_factor = (1-alpha) + z*(2a-1)
    q = pred_prob + z - 2.0 * (pred_prob * z)
    q = jnp.maximum(q, 0.0)                 # guard 1-ulp negatives before sqrt
    alpha_factor = (1.0 - alpha) + z * (2.0 * alpha - 1.0)
    if gamma == 1.5:
        modulating_factor = q * jnp.sqrt(q)
    elif gamma == 2.0:
        modulating_factor = q * q
    elif gamma == 1.0:
        modulating_factor = q
    else:
        modulating_factor = q ** gamma
    loss = bce * alpha_factor * modulating_factor

    tr = loss.shape[0]
    # In-kernel tail masking: only generated when the last block is partial.
    if valid_rows_last < tr:
        limit = jnp.where(i == pl.num_programs(0) - 1, valid_rows_last, tr)
        row_ids = jax.lax.broadcasted_iota(jnp.int32, loss.shape, 0)
        loss = jnp.where(row_ids < limit, loss, 0.0)

    # Accumulate per-(8,128) vreg partial sums on the VPU; the final
    # cross-lane reduce is deferred to the wrapper (XLA).
    out_ref[...] += loss.reshape(tr // SUBLANES, SUBLANES, LANES).sum(axis=0)


def focal_loss(pred, true, gamma=GAMMA, alpha=ALPHA):
    """Pallas TPU focal loss with mean reduction.  pred/true: same shape."""
    assert pred.shape == true.shape
    total_elems = math.prod(pred.shape)

    pred_flat = pred.reshape(-1)
    true_flat = true.reshape(-1)

    # Lane-dense layout: (rows, 128).  Only pad the sub-128 remainder (rare;
    # never for shapes whose element count is a multiple of 128) -- row-level
    # non-alignment is handled by in-kernel masking, not padding.
    rem = total_elems % LANES
    if rem:
        pad = LANES - rem
        pred_flat = jnp.concatenate(
            [pred_flat, jnp.full((pad,), PAD_LOGIT, dtype=pred_flat.dtype)])
        true_flat = jnp.concatenate(
            [true_flat, jnp.zeros((pad,), dtype=true_flat.dtype)])
    rows = (total_elems + (LANES - rem if rem else 0)) // LANES

    pred2d = pred_flat.reshape(rows, LANES)
    true2d = true_flat.reshape(rows, LANES)

    # Tile rows: as big as possible (up to 2 MiB/input/buffer), rounded to the
    # sublane packing of the narrowest input dtype (8 f32 / 16 bf16 / 32 int8).
    packing = max(_sublane_packing(pred2d.dtype), _sublane_packing(true2d.dtype))
    tile_rows = min(MAX_TILE_ROWS, _round_up(rows, packing))
    nblocks = _cdiv(rows, tile_rows)
    valid_rows_last = rows - (nblocks - 1) * tile_rows

    kernel = functools.partial(_focal_loss_kernel, gamma=gamma, alpha=alpha,
                               valid_rows_last=valid_rows_last)

    in_map = lambda i: (i, 0)
    n_elems = rows * LANES
    in_bytes = (pred2d.size * pred2d.dtype.itemsize
                + true2d.size * true2d.dtype.itemsize)
    cost = pl.CostEstimate(flops=25 * n_elems,
                           transcendentals=4 * n_elems,
                           bytes_accessed=in_bytes + SUBLANES * LANES * 4)

    partials = pl.pallas_call(
        kernel,
        out_shape=jax.ShapeDtypeStruct((SUBLANES, LANES), jnp.float32),
        grid_spec=pltpu.PrefetchScalarGridSpec(
            num_scalar_prefetch=0,
            grid=(nblocks,),
            in_specs=[
                pl.BlockSpec((tile_rows, LANES), in_map),
                pl.BlockSpec((tile_rows, LANES), in_map),
            ],
            # Output block stays resident across the reduction axis.
            out_specs=pl.BlockSpec((SUBLANES, LANES), lambda i: (0, 0)),
        ),
        compiler_params=pltpu.CompilerParams(
            dimension_semantics=("arbitrary",),
            vmem_limit_bytes=32 * 1024 * 1024),
        cost_estimate=cost,
    )(pred2d, true2d)

    # reduction == 'mean' (BCEWithLogitsLoss default); padded/masked elements
    # contribute zero, so divide by the true element count.
    return jnp.sum(partials) / jnp.float32(total_elems)


def focal_loss_ref(pred, true, gamma=GAMMA, alpha=ALPHA):
    """Pure-JAX reference (mirrors the PyTorch module)."""
    x = pred.astype(jnp.float32)
    z = true.astype(jnp.float32)
    bce = jnp.maximum(x, 0.0) - x * z + jnp.log1p(jnp.exp(-jnp.abs(x)))
    p = jax.nn.sigmoid(x)
    p_t = z * p + (1.0 - z) * (1.0 - p)
    alpha_factor = z * alpha + (1.0 - z) * (1.0 - alpha)
    modulating_factor = (1.0 - p_t) ** gamma
    return jnp.mean(bce * alpha_factor * modulating_factor)


if __name__ == "__main__":
    key = jax.random.PRNGKey(0)
    k1, k2 = jax.random.split(key)

    # Small NCHW-shaped inputs: logits and binary-ish targets.
    shape = (2, 4, 16, 16)
    pred = jax.random.normal(k1, shape, dtype=jnp.float32) * 2.0
    true = (jax.random.uniform(k2, shape) > 0.7).astype(jnp.float32)

    out = focal_loss(pred, true)
    out = jax.block_until_ready(out)

    ref = focal_loss_ref(pred, true)
    assert jnp.allclose(out, ref, rtol=1e-5, atol=1e-6), (out, ref)

    print("KERNEL_OK")
</pallas_src>

<mosaic_0001>
module attributes {stable_mosaic.version = 11 : i64} {
  func.func @_focal_loss_kernel(%arg0: i32, %arg1: memref<16x128xf32, #tpu.memory_space<vmem>>, %arg2: memref<16x128xf32, #tpu.memory_space<vmem>>, %arg3: memref<8x128xf32, #tpu.memory_space<vmem>>) attributes {dimension_semantics = [#tpu.dimension_semantics<arbitrary>], iteration_bounds = array<i64: 1>, scalar_prefetch = 0 : i64, scratch_operands = 0 : i64, tpu.core_type = #tpu.core_type<tc>, window_params = [{transform_indices = @transform_0, window_bounds = array<i64: 16, 128>}, {transform_indices = @transform_1, window_bounds = array<i64: 16, 128>}, {pipeline_mode = #tpu.pipeline_mode<synchronous>, transform_indices = @transform_2, window_bounds = array<i64: 8, 128>}]} {
    %c0_i32 = arith.constant 0 : i32
    %0 = arith.cmpi eq, %arg0, %c0_i32 : i32
    %1 = arith.extui %0 : i1 to i32
    %c0_i32_0 = arith.constant 0 : i32
    %2 = arith.cmpi ne, %1, %c0_i32_0 : i32
    scf.if %2 {
      %cst_17 = arith.constant 0.000000e+00 : f32
      %43 = vector.broadcast %cst_17 : f32 to vector<8x128xf32>
      %c0_18 = arith.constant 0 : index
      %c0_19 = arith.constant 0 : index
      %44 = vector.load %arg3[%c0_18, %c0_19] : memref<8x128xf32, #tpu.memory_space<vmem>>, vector<8x128xf32>
      tpu.vector_store %arg3[%c0_18, %c0_19], %43 {strides = array<i32>} : memref<8x128xf32, #tpu.memory_space<vmem>>, vector<8x128xf32>,
    } else {
    }
    %c0 = arith.constant 0 : index
    %c0_1 = arith.constant 0 : index
    %3 = vector.load %arg1[%c0, %c0_1] : memref<16x128xf32, #tpu.memory_space<vmem>>, vector<16x128xf32>
    %c0_2 = arith.constant 0 : index
    %c0_3 = arith.constant 0 : index
    %4 = vector.load %arg2[%c0_2, %c0_3] : memref<16x128xf32, #tpu.memory_space<vmem>>, vector<16x128xf32>
    %5 = math.absf %3 : vector<16x128xf32>
    %cst = arith.constant 0.000000e+00 : f32
    %6 = vector.broadcast %cst : f32 to vector<16x128xf32>
    %7 = arith.subf %6, %5 : vector<16x128xf32>
    %8 = math.exp %7 : vector<16x128xf32>
    %cst_4 = arith.constant 1.000000e+00 : f32
    %9 = vector.broadcast %cst_4 : f32 to vector<16x128xf32>
    %10 = arith.addf %9, %8 : vector<16x128xf32>
    %11 = tpu.reciprocal %10 : vector<16x128xf32> -> vector<16x128xf32>
    %cst_5 = arith.constant 0.000000e+00 : f32
    %12 = vector.broadcast %cst_5 : f32 to vector<16x128xf32>
    %13 = arith.maximumf %3, %12 : vector<16x128xf32>
    %14 = arith.mulf %3, %4 : vector<16x128xf32>
    %15 = arith.subf %13, %14 : vector<16x128xf32>
    %16 = math.log %10 : vector<16x128xf32>
    %17 = arith.addf %15, %16 : vector<16x128xf32>
    %cst_6 = arith.constant 0.000000e+00 : f32
    %18 = vector.broadcast %cst_6 : f32 to vector<16x128xf32>
    %19 = arith.cmpf oge, %3, %18 : vector<16x128xf32>
    %cst_7 = arith.constant 1.000000e+00 : f32
    %20 = vector.broadcast %cst_7 : f32 to vector<16x128xf32>
    %21 = arith.select %19, %20, %8 : vector<16x128xi1>, vector<16x128xf32>
    %22 = arith.mulf %21, %11 : vector<16x128xf32>
    %23 = arith.addf %22, %4 : vector<16x128xf32>
    %24 = arith.mulf %22, %4 : vector<16x128xf32>
    %cst_8 = arith.constant 2.000000e+00 : f32
    %25 = vector.broadcast %cst_8 : f32 to vector<16x128xf32>
    %26 = arith.mulf %25, %24 : vector<16x128xf32>
    %27 = arith.subf %23, %26 : vector<16x128xf32>
    %cst_9 = arith.constant 0.000000e+00 : f32
    %28 = vector.broadcast %cst_9 : f32 to vector<16x128xf32>
    %29 = arith.maximumf %27, %28 : vector<16x128xf32>
    %cst_10 = arith.constant -5.000000e-01 : f32
    %30 = vector.broadcast %cst_10 : f32 to vector<16x128xf32>
    %31 = arith.mulf %4, %30 : vector<16x128xf32>
    %cst_11 = arith.constant 7.500000e-01 : f32
    %32 = vector.broadcast %cst_11 : f32 to vector<16x128xf32>
    %33 = arith.addf %32, %31 : vector<16x128xf32>
    %34 = math.sqrt %29 : vector<16x128xf32>
    %35 = arith.mulf %29, %34 : vector<16x128xf32>
    %36 = arith.mulf %17, %33 : vector<16x128xf32>
    %37 = arith.mulf %36, %35 : vector<16x128xf32>
    %c0_12 = arith.constant 0 : index
    %c0_13 = arith.constant 0 : index
    %38 = vector.load %arg3[%c0_12, %c0_13] : memref<8x128xf32, #tpu.memory_space<vmem>>, vector<8x128xf32>
    %39 = vector.shape_cast %37 : vector<16x128xf32> to vector<2x8x128xf32>
    %cst_14 = arith.constant dense<0.000000e+00> : vector<8x128xf32>
    %40 = vector.multi_reduction <add>, %39, %cst_14 [0] : vector<2x8x128xf32> to vector<8x128xf32>
    %41 = arith.addf %38, %40 : vector<8x128xf32>
    %c0_15 = arith.constant 0 : index
    %c0_16 = arith.constant 0 : index
    %42 = vector.load %arg3[%c0_15, %c0_16] : memref<8x128xf32, #tpu.memory_space<vmem>>, vector<8x128xf32>
    tpu.vector_store %arg3[%c0_15, %c0_16], %41 {strides = array<i32>} : memref<8x128xf32, #tpu.memory_space<vmem>>, vector<8x128xf32>,
    return
  }
  func.func @transform_0(%arg0: i32) -> (i32, i32) {
    %c0_i32 = arith.constant 0 : i32
    %c0_i32_0 = arith.constant 0 : i32
    return %arg0, %c0_i32 : i32, i32
  }
  func.func @transform_1(%arg0: i32) -> (i32, i32) {
    %c0_i32 = arith.constant 0 : i32
    %c0_i32_0 = arith.constant 0 : i32
    return %arg0, %c0_i32 : i32, i32
  }
  func.func @transform_2(%arg0: i32) -> (i32, i32) {
    %c0_i32 = arith.constant 0 : i32
    %c0_i32_0 = arith.constant 0 : i32
    %c0_i32_1 = arith.constant 0 : i32
    return %c0_i32, %c0_i32_0 : i32, i32
  }
}

</mosaic_0001>

<llo_original>
// kernel: tpu_custom_call.1
$region0: #{tpu_custom_call.1}
  #allocation0 [shape = 'u32[]', space=smem, size = 0x4, offset = 0x4, fixed_abs, tag = 'smem constant byte address 0x4 - core index']
  #allocation1 [shape = 'u32[144,128]{1,0:T(1,128)}', space=vmem, size = 0x12000, scoped, tag = 'internal scratch']
  %s0 = inlined_call_operand.hbm [shape: f32[16,128], index: 0, kind: input, shape index: {}]
  %s1 = inlined_call_operand.hbm [shape: f32[16,128], index: 1, kind: input, shape index: {}]
  %s2 = inlined_call_operand.hbm [shape: f32[8,128], index: 2, kind: output, shape index: {}]
  %s3 = sld [smem:[#allocation0]]
  $region30: #{tpu_custom_call.1} parent=0
    _
  %s5 = ssub.s32 1, %s3
  %s6 = scalar_select 0, %s5, %s3
  $region1: #{tpu_custom_call.1} parent=0
    #allocation2 [shape = 'u8[8192]{0}', space=vmem, size = 0x2000, scoped, tag = 'input window, operand 0, single buffered']
    #allocation3 [shape = 's32[1]{0}', space=sflag, size = 0x4, scoped, tag = 'scoped memory for tpu_custom_call.1']
    #allocation4 [shape = 's32[1]{0}', space=sflag, size = 0x4, scoped, tag = 'scoped memory for tpu_custom_call.1']
    #allocation5 [shape = 'u8[8192]{0}', space=vmem, size = 0x2000, scoped, tag = 'input window, operand 1, single buffered']
    #allocation6 [shape = 's32[1]{0}', space=sflag, size = 0x4, scoped, tag = 'scoped memory for tpu_custom_call.1']
    #allocation7 [shape = 'u8[4096]{0}', space=vmem, size = 0x1000, scoped, tag = 'output window, operand 0, single buffered']
    %7 = vsyncpa [#allocation3], 0
    %8 = vsyncpa [#allocation6], 0
    %9 = vsyncpa [#allocation4], 0
    // Predicated region
    $region2: #{tpu_custom_call.1} parent=1 // pred_check
      _
    $region3: #{tpu_custom_call.1} parent=1 // pred_check_branch
      %11 = sbr.rel (0) target = $region5
    $region4: #{tpu_custom_call.1} parent=1 // pred_region
      %s13 = ssub.s32 256, 256
      %14 = vsyncadd [#allocation3], %s13
      %s15 = sshll.u32 [#allocation2], 4
      %s16 = int_to_ptr.vmem [resolvable:$true] %s15
      %21 = dma.hbm_to_vmem [thread:$0]  %s0, 256, %s16, [#allocation3], 128, 128, 8
    $region5: #{tpu_custom_call.1} parent=1 // pred_fallthru
      _
    // Predicated region
    $region6: #{tpu_custom_call.1} parent=1 // pred_check
      _
    $region7: #{tpu_custom_call.1} parent=1 // pred_check_branch
      %23 = sbr.rel (0) target = $region9
    $region8: #{tpu_custom_call.1} parent=1 // pred_region
      %s25 = ssub.s32 256, 256
      %26 = vsyncadd [#allocation6], %s25
      %s27 = sshll.u32 [#allocation5], 4
      %s28 = int_to_ptr.vmem [resolvable:$true] %s27
      %33 = dma.hbm_to_vmem [thread:$0]  %s1, 256, %s28, [#allocation6], 128, 128, 8
    $region9: #{tpu_custom_call.1} parent=1 // pred_fallthru
      _
    // Predicated region
    $region10: #{tpu_custom_call.1} parent=1 // pred_check
      _
    $region11: #{tpu_custom_call.1} parent=1 // pred_check_branch
      %35 = sbr.rel (0) target = $region13
    $region12: #{tpu_custom_call.1} parent=1 // pred_region
      %36 = dma.done [#allocation3], 256
    $region13: #{tpu_custom_call.1} parent=1 // pred_fallthru
      _
    // Predicated region
    $region14: #{tpu_custom_call.1} parent=1 // pred_check
      _
    $region15: #{tpu_custom_call.1} parent=1 // pred_check_branch
      %38 = sbr.rel (0) target = $region17
    $region16: #{tpu_custom_call.1} parent=1 // pred_region
      %39 = dma.done [#allocation6], 256
    $region17: #{tpu_custom_call.1} parent=1 // pred_fallthru
      _
    %p40 = scmp.eq.s32.totalorder 0, 0
    // Predicated region
    $region18: #{tpu_custom_call.1} parent=1 // pred_check
      %p41 = pneg %p40
    $region19: #{tpu_custom_call.1} parent=1 // pred_check_branch
      %43 = sbr.rel (%p41) target = $region21
    $region20: #{tpu_custom_call.1} parent=1 // pred_region
      %44 = vst [vmem:[#allocation7] sm:$0xff] 0.0
    $region21: #{tpu_custom_call.1} parent=1 // pred_fallthru
      _
    %v45 = vld [vmem:[#allocation2] sm:$0xff]
    %v46 = vld [vmem:[#allocation2 + $0x8] sm:$0xff]
    %v47 = vld [vmem:[#allocation5] sm:$0xff]
    %v48 = vld [vmem:[#allocation5 + $0x8] sm:$0xff]
    %v49 = vand.u32 2147483647, %v45
    %v50 = vand.u32 2147483647, %v46
    %v51 = vsub.f32 0.0, %v49
    %v52 = vsub.f32 0.0, %v50
    %v53 = vmul.f32 %v51, 1.442695
    %v54 = vpow.pop %v53
    %v55 = vmul.f32 %v52, 1.442695
    %v56 = vpow.pop %v55
    %v57 = vadd.f32 %v54, 1.0
    %v58 = vadd.f32 %v56, 1.0
    %v59 = vrcp.pop %v57
    %v60 = vrcp.pop %v58
    %v61 = vmax.f32 %v45, 0.0
    %v62 = vmax.f32 %v46, 0.0
    %v63 = vmul.f32 %v45, %v47
    %v64 = vmul.f32 %v46, %v48
    %v65 = vsub.f32 %v61, %v63
    %v66 = vsub.f32 %v62, %v64
    %v67 = vlog2.pop %v57
    %v68 = vmul.f32 %v67, 0.6931472
    %v69 = vlog2.pop %v58
    %v70 = vmul.f32 %v69, 0.6931472
    %v71 = vadd.f32 %v65, %v68
    %v72 = vadd.f32 %v66, %v70
    %vm73 = vcmp.ge.f32.partialorder %v45, 0.0
    %vm74 = vcmp.ge.f32.partialorder %v46, 0.0
    %v75 = vsel %vm73, 1.0, %v54
    %v76 = vsel %vm74, 1.0, %v56
    %v77 = vmul.f32 %v75, %v59
    %v78 = vmul.f32 %v76, %v60
    %v79 = vadd.f32 %v77, %v47
    %v80 = vadd.f32 %v78, %v48
    %v81 = vmul.f32 %v77, %v47
    %v82 = vmul.f32 %v78, %v48
    %v83 = vmul.f32 %v81, 2.0
    %v84 = vmul.f32 %v82, 2.0
    %v85 = vsub.f32 %v79, %v83
    %v86 = vsub.f32 %v80, %v84
    %v87 = vmax.f32 %v85, 0.0
    %v88 = vmax.f32 %v86, 0.0
    %v89 = vmul.f32 %v47, -0.5
    %v90 = vmul.f32 %v48, -0.5
    %v91 = vadd.f32 %v89, 0.75
    %v92 = vadd.f32 %v90, 0.75
    %v93 = vrsqrt.pop %v87
    %v94 = vmul.f32 %v87, %v93
    %vm95 = vcmp.eq.f32.partialorder %v87, inf
    %v96 = vsel %vm95, %v87, %v94
    %vm97 = vcmp.eq.f32.partialorder %v87, 0.0
    %v98 = vand.u32 %v87, 2147483648
    %v99 = vsel %vm97, %v98, %v96
    %v100 = vrsqrt.pop %v88
    %v101 = vmul.f32 %v88, %v100
    %vm102 = vcmp.eq.f32.partialorder %v88, inf
    %v103 = vsel %vm102, %v88, %v101
    %vm104 = vcmp.eq.f32.partialorder %v88, 0.0
    %v105 = vand.u32 %v88, 2147483648
    %v106 = vsel %vm104, %v105, %v103
    %v107 = vmul.f32 %v87, %v99
    %v108 = vmul.f32 %v88, %v106
    %v109 = vmul.f32 %v71, %v91
    %v110 = vmul.f32 %v72, %v92
    %v111 = vmul.f32 %v109, %v107
    %v112 = vmul.f32 %v110, %v108
    %v113 = vld [vmem:[#allocation7] sm:$0xff]
    %v114 = vadd.f32 %v111, %v112
    %v115 = vadd.f32 %v113, %v114
    %116 = vst [vmem:[#allocation7] sm:$0xff] %v115
    // Predicated region
    $region22: #{tpu_custom_call.1} parent=1 // pred_check
      _
    $region23: #{tpu_custom_call.1} parent=1 // pred_check_branch
      %118 = sbr.rel (0) target = $region25
    $region24: #{tpu_custom_call.1} parent=1 // pred_region
      %s120 = ssub.s32 128, 128
      %121 = vsyncadd [#allocation4], %s120
      %s123 = sshll.u32 [#allocation7], 4
      %s124 = int_to_ptr.vmem [resolvable:$true] %s123
      %126 = dma.vmem_to_hbm [thread:$0]  %s124, 128, %s2, [#allocation4]
    $region25: #{tpu_custom_call.1} parent=1 // pred_fallthru
      _
    // Predicated region
    $region26: #{tpu_custom_call.1} parent=1 // pred_check
      _
    $region27: #{tpu_custom_call.1} parent=1 // pred_check_branch
      %128 = sbr.rel (0) target = $region29
    $region28: #{tpu_custom_call.1} parent=1 // pred_region
      %129 = dma.done [#allocation4], 128
    $region29: #{tpu_custom_call.1} parent=1 // pred_fallthru
      _
    %130 = vsyncpa [#allocation3], 1
    %131 = vsyncpa [#allocation6], 1
    %132 = vsyncpa [#allocation4], 1

</llo_original>
